<compile_context>
chip_gen: v7x
topology: tpu7x:2x2x1
jax: 0.10.0
libtpu: 0.0.40
codegen_flags: <defaults>
</compile_context>

<pallas_src>
import jax
import jax.numpy as jnp
from jax.experimental import pallas as pl

# ---- PatchTSTConfig-like settings (small synthetic sizes) -------------------
BATCH = 2
CHANNELS = 4            # num_input_channels
NUM_PATCHES = 8
D_MODEL = 32
PRED_LEN = 128          # prediction_length (multiple of 128 -> lane-dense store)
# share_projection=True, head_dropout=0 (identity), distribution_output=None.
# TODO(synk): share_projection=False (per-channel nn.ModuleList Linear heads) and
#             distribution_output parameter projections are not implemented;
#             head_dropout > 0 is identity here (eval mode / p=0).


# -----------------------------------------------------------------------------
# Kernels
# -----------------------------------------------------------------------------
def _proj_kernel(x_ref, w_ref, b_ref, o_ref):
    """(N, K) @ (K, L) + (1, L) -> (N, L). One MXU matmul, f32 accumulate."""
    y = jnp.dot(x_ref[...], w_ref[...], preferred_element_type=jnp.float32)
    o_ref[...] = (y + b_ref[...]).astype(o_ref.dtype)


def _max_proj_kernel(x_ref, w_ref, b_ref, o_ref):
    """max over patches then project: (N, P, D) -> (N, D) @ (D, L) + (1, L)."""
    pooled = jnp.max(x_ref[...], axis=1)                      # (N, D)
    y = jnp.dot(pooled, w_ref[...], preferred_element_type=jnp.float32)
    o_ref[...] = (y + b_ref[...]).astype(o_ref.dtype)


# -----------------------------------------------------------------------------
# Wrapper
# -----------------------------------------------------------------------------
def patchtst_prediction_head(embedding, weight, bias, *,
                             pooling_type=None, use_cls_token=False):
    """embedding (B, C, P, D) -> forecast (B, prediction_length, C)."""
    B, C, P, D = embedding.shape
    L = weight.shape[1]
    N = B * C

    # Fold linear poolings into an expanded (P*D, L) weight so cls / mean reuse
    # the lane-dense flatten path (one (N, P*D) x (P*D, L) MXU matmul).
    if use_cls_token:
        assert weight.shape[0] == D, (weight.shape, D)
        w_eff = jnp.zeros((P * D, L), weight.dtype).at[:D, :].set(weight)
        mode = "flatten"
    elif pooling_type == "mean":
        assert weight.shape[0] == D, (weight.shape, D)
        w_scaled = (weight.astype(jnp.float32) / jnp.float32(P)).astype(weight.dtype)
        w_eff = jnp.tile(w_scaled, (P, 1))                    # (P*D, L)
        mode = "flatten"
    elif pooling_type == "max":
        assert weight.shape[0] == D, (weight.shape, D)
        w_eff = weight
        mode = "max"
    else:  # flatten head: nn.Flatten(start_dim=2) + Linear(P*D, L)
        assert weight.shape[0] == P * D, (weight.shape, P * D)
        w_eff = weight
        mode = "flatten"

    if mode == "flatten":
        # Free row-major reshape wrapper-side -> lane-dense (N, P*D) kernel input.
        x = embedding.reshape(N, P * D)
        out = pl.pallas_call(
            _proj_kernel,
            out_shape=jax.ShapeDtypeStruct((N, L), embedding.dtype),
            in_specs=[pl.BlockSpec((N, P * D), lambda: (0, 0)),
                      pl.BlockSpec((P * D, L), lambda: (0, 0)),
                      pl.BlockSpec((1, L), lambda: (0, 0))],
            out_specs=pl.BlockSpec((N, L), lambda: (0, 0)),
        )(x, w_eff, bias)
    else:  # max pooling (non-linear, keep the tiny in-kernel reduce)
        x = embedding.reshape(N, P, D)
        out = pl.pallas_call(
            _max_proj_kernel,
            out_shape=jax.ShapeDtypeStruct((N, L), embedding.dtype),
            in_specs=[pl.BlockSpec((N, P, D), lambda: (0, 0, 0)),
                      pl.BlockSpec((D, L), lambda: (0, 0)),
                      pl.BlockSpec((1, L), lambda: (0, 0))],
            out_specs=pl.BlockSpec((N, L), lambda: (0, 0)),
        )(x, w_eff, bias)

    out = out.reshape(B, C, L)                    # (bs, num_channels, pred_len)
    return jnp.transpose(out, (0, 2, 1))          # (bs, pred_len, num_channels)


# -----------------------------------------------------------------------------
# Pure-JAX reference (mirrors the PyTorch forward, shared-projection path).
# -----------------------------------------------------------------------------
def _ref_head(embedding, weight, bias, *, pooling_type=None, use_cls_token=False):
    B, C, P, D = embedding.shape
    if use_cls_token:
        pooled = embedding[:, :, 0, :]                      # (B, C, D)
    elif pooling_type == "mean":
        pooled = embedding.mean(axis=2)
    elif pooling_type == "max":
        pooled = embedding.max(axis=2)
    else:
        pooled = embedding.reshape(B, C, P * D)             # Flatten(start_dim=2)
    out = pooled @ weight + bias[0]                         # (B, C, L)
    return jnp.transpose(out, (0, 2, 1))                    # (B, L, C)


# -----------------------------------------------------------------------------
if __name__ == "__main__":
    key = jax.random.PRNGKey(0)
    k_emb, k_wf, k_bf, k_wp, k_bp = jax.random.split(key, 5)

    embedding = jax.random.normal(
        k_emb, (BATCH, CHANNELS, NUM_PATCHES, D_MODEL), dtype=jnp.float32)

    def w(k, shape, scale=0.05):
        return (jax.random.normal(k, shape) * scale).astype(jnp.float32)

    # Shared-projection weights for the flatten head (head_dim = P * D) and for
    # the pooled / cls heads (head_dim = D).
    w_flat = w(k_wf, (NUM_PATCHES * D_MODEL, PRED_LEN))
    b_flat = w(k_bf, (1, PRED_LEN))
    w_pool = w(k_wp, (D_MODEL, PRED_LEN))
    b_pool = w(k_bp, (1, PRED_LEN))

    configs = [
        dict(pooling_type=None,   use_cls_token=False, w=w_flat, b=b_flat),  # flatten
        dict(pooling_type="mean", use_cls_token=False, w=w_pool, b=b_pool),
        dict(pooling_type="max",  use_cls_token=False, w=w_pool, b=b_pool),
        dict(pooling_type=None,   use_cls_token=True,  w=w_pool, b=b_pool),  # cls token
    ]

    for cfg in configs:
        out = patchtst_prediction_head(
            embedding, cfg["w"], cfg["b"],
            pooling_type=cfg["pooling_type"], use_cls_token=cfg["use_cls_token"])
        out = jax.block_until_ready(out)

        ref = _ref_head(
            embedding, cfg["w"], cfg["b"],
            pooling_type=cfg["pooling_type"], use_cls_token=cfg["use_cls_token"])

        assert out.shape == (BATCH, PRED_LEN, CHANNELS), out.shape
        assert jnp.allclose(out, ref, atol=1e-3, rtol=1e-3), (
            f"mismatch vs JAX reference for config {cfg['pooling_type']}/"
            f"cls={cfg['use_cls_token']}")

    print("KERNEL_OK")
</pallas_src>

<mosaic_0001>
module attributes {stable_mosaic.version = 11 : i64} {
  func.func @_proj_kernel(%arg0: memref<8x256xf32, #tpu.memory_space<vmem>>, %arg1: memref<256x128xf32, #tpu.memory_space<vmem>>, %arg2: memref<1x128xf32, #tpu.memory_space<vmem>>, %arg3: memref<8x128xf32, #tpu.memory_space<vmem>>) attributes {dimension_semantics = [], scalar_prefetch = 0 : i64, scratch_operands = 0 : i64, tpu.core_type = #tpu.core_type<tc>} {
    %c0 = arith.constant 0 : index
    %c0_0 = arith.constant 0 : index
    %0 = vector.load %arg0[%c0, %c0_0] : memref<8x256xf32, #tpu.memory_space<vmem>>, vector<8x256xf32>
    %c0_1 = arith.constant 0 : index
    %c0_2 = arith.constant 0 : index
    %1 = vector.load %arg1[%c0_1, %c0_2] : memref<256x128xf32, #tpu.memory_space<vmem>>, vector<256x128xf32>
    %cst = arith.constant dense<0.000000e+00> : vector<8x128xf32>
    %2 = tpu.matmul %0, %1, %cst {dimension_numbers = #tpu.dot_dimension_numbers<[1], [0], [0], [1], [0, 0, 1, 1], [], []>} : vector<8x256xf32>, vector<256x128xf32>, vector<8x128xf32> -> vector<8x128xf32>
    %c0_3 = arith.constant 0 : index
    %c0_4 = arith.constant 0 : index
    %3 = vector.load %arg2[%c0_3, %c0_4] : memref<1x128xf32, #tpu.memory_space<vmem>>, vector<1x128xf32>
    %4 = vector.broadcast %3 : vector<1x128xf32> to vector<8x128xf32>
    %5 = arith.addf %2, %4 : vector<8x128xf32>
    %c0_5 = arith.constant 0 : index
    %c0_6 = arith.constant 0 : index
    %6 = vector.load %arg3[%c0_5, %c0_6] : memref<8x128xf32, #tpu.memory_space<vmem>>, vector<8x128xf32>
    tpu.vector_store %arg3[%c0_5, %c0_6], %5 {strides = array<i32>} : memref<8x128xf32, #tpu.memory_space<vmem>>, vector<8x128xf32>,
    return
  }
}

</mosaic_0001>

<llo_original>
// kernel: tpu_custom_call.1
$region0: #{tpu_custom_call.1}
  #allocation0 [shape = 'u32[]', space=smem, size = 0x4, offset = 0x4, fixed_abs, tag = 'smem constant byte address 0x4 - core index']
  #allocation1 [shape = 'u32[144,128]{1,0:T(1,128)}', space=vmem, size = 0x12000, scoped, tag = 'internal scratch']
  %s0 = inlined_call_operand.hbm [shape: f32[8,256], index: 0, kind: input, shape index: {}]
  %s1 = inlined_call_operand.hbm [shape: f32[256,128], index: 1, kind: input, shape index: {}]
  %s2 = inlined_call_operand.vmem [shape: f32[1,128], index: 2, kind: input, shape index: {}]
  %s3 = inlined_call_operand.hbm [shape: f32[8,128], index: 3, kind: output, shape index: {}]
  %s4 = sld [smem:[#allocation0]]
  $region30: #{tpu_custom_call.1} parent=0
    _
  %s6 = ssub.s32 1, %s4
  %s7 = scalar_select 0, %s6, %s4
  $region1: #{tpu_custom_call.1} parent=0
    #allocation2 [shape = 'u8[8192]{0}', space=vmem, size = 0x2000, scoped, tag = 'input window, operand 0, single buffered']
    #allocation3 [shape = 's32[1]{0}', space=sflag, size = 0x4, scoped, tag = 'scoped memory for tpu_custom_call.1']
    #allocation4 [shape = 's32[1]{0}', space=sflag, size = 0x4, scoped, tag = 'scoped memory for tpu_custom_call.1']
    #allocation5 [shape = 'u8[131072]{0}', space=vmem, size = 0x20000, scoped, tag = 'input window, operand 1, single buffered']
    #allocation6 [shape = 's32[1]{0}', space=sflag, size = 0x4, scoped, tag = 'scoped memory for tpu_custom_call.1']
    #allocation7 [shape = 'u8[4096]{0}', space=vmem, size = 0x1000, scoped, tag = 'output window, operand 0, single buffered']
    %8 = vsyncpa [#allocation3], 0
    %9 = vsyncpa [#allocation6], 0
    %10 = vsyncpa [#allocation4], 0
    // Predicated region
    $region2: #{tpu_custom_call.1} parent=1 // pred_check
      _
    $region3: #{tpu_custom_call.1} parent=1 // pred_check_branch
      %12 = sbr.rel (0) target = $region5
    $region4: #{tpu_custom_call.1} parent=1 // pred_region
      %s14 = ssub.s32 256, 256
      %15 = vsyncadd [#allocation3], %s14
      %s17 = sshll.u32 [#allocation2], 4
      %s18 = int_to_ptr.vmem [resolvable:$true] %s17
      %20 = dma.hbm_to_vmem [thread:$0]  %s0, 256, %s18, [#allocation3]
    $region5: #{tpu_custom_call.1} parent=1 // pred_fallthru
      _
    // Predicated region
    $region6: #{tpu_custom_call.1} parent=1 // pred_check
      _
    $region7: #{tpu_custom_call.1} parent=1 // pred_check_branch
      %22 = sbr.rel (0) target = $region9
    $region8: #{tpu_custom_call.1} parent=1 // pred_region
      %s24 = ssub.s32 4096, 4096
      %25 = vsyncadd [#allocation6], %s24
      %s26 = sshll.u32 [#allocation5], 4
      %s27 = int_to_ptr.vmem [resolvable:$true] %s26
      %32 = dma.hbm_to_vmem [thread:$0]  %s1, 4096, %s27, [#allocation6], 128, 128, 8
    $region9: #{tpu_custom_call.1} parent=1 // pred_fallthru
      _
    // Predicated region
    $region10: #{tpu_custom_call.1} parent=1 // pred_check
      _
    $region11: #{tpu_custom_call.1} parent=1 // pred_check_branch
      %34 = sbr.rel (0) target = $region13
    $region12: #{tpu_custom_call.1} parent=1 // pred_region
      _
    $region13: #{tpu_custom_call.1} parent=1 // pred_fallthru
      _
    // Predicated region
    $region14: #{tpu_custom_call.1} parent=1 // pred_check
      _
    $region15: #{tpu_custom_call.1} parent=1 // pred_check_branch
      %36 = sbr.rel (0) target = $region17
    $region16: #{tpu_custom_call.1} parent=1 // pred_region
      %37 = dma.done [#allocation3], 256
    $region17: #{tpu_custom_call.1} parent=1 // pred_fallthru
      _
    // Predicated region
    $region18: #{tpu_custom_call.1} parent=1 // pred_check
      _
    $region19: #{tpu_custom_call.1} parent=1 // pred_check_branch
      %39 = sbr.rel (0) target = $region21
    $region20: #{tpu_custom_call.1} parent=1 // pred_region
      %40 = dma.done [#allocation6], 4096
    $region21: #{tpu_custom_call.1} parent=1 // pred_fallthru
      _
    %v41 = vld [vmem:[#allocation2] sm:$0xff]
    %v42 = vld [vmem:[#allocation2 + $0x8] sm:$0xff]
    %v43 = vld [vmem:[#allocation5] sm:$0xff]
    %v44 = vld [vmem:[#allocation5 + $0x8] sm:$0xff]
    %v45 = vld [vmem:[#allocation5 + $0x10] sm:$0xff]
    %v46 = vld [vmem:[#allocation5 + $0x18] sm:$0xff]
    %v47 = vld [vmem:[#allocation5 + $0x20] sm:$0xff]
    %v48 = vld [vmem:[#allocation5 + $0x28] sm:$0xff]
    %v49 = vld [vmem:[#allocation5 + $0x30] sm:$0xff]
    %v50 = vld [vmem:[#allocation5 + $0x38] sm:$0xff]
    %v51 = vld [vmem:[#allocation5 + $0x40] sm:$0xff]
    %v52 = vld [vmem:[#allocation5 + $0x48] sm:$0xff]
    %v53 = vld [vmem:[#allocation5 + $0x50] sm:$0xff]
    %v54 = vld [vmem:[#allocation5 + $0x58] sm:$0xff]
    %v55 = vld [vmem:[#allocation5 + $0x60] sm:$0xff]
    %v56 = vld [vmem:[#allocation5 + $0x68] sm:$0xff]
    %v57 = vld [vmem:[#allocation5 + $0x70] sm:$0xff]
    %v58 = vld [vmem:[#allocation5 + $0x78] sm:$0xff]
    %v59 = vld [vmem:[#allocation5 + $0x80] sm:$0xff]
    %v60 = vld [vmem:[#allocation5 + $0x88] sm:$0xff]
    %v61 = vld [vmem:[#allocation5 + $0x90] sm:$0xff]
    %v62 = vld [vmem:[#allocation5 + $0x98] sm:$0xff]
    %v63 = vld [vmem:[#allocation5 + $0xa0] sm:$0xff]
    %v64 = vld [vmem:[#allocation5 + $0xa8] sm:$0xff]
    %v65 = vld [vmem:[#allocation5 + $0xb0] sm:$0xff]
    %v66 = vld [vmem:[#allocation5 + $0xb8] sm:$0xff]
    %v67 = vld [vmem:[#allocation5 + $0xc0] sm:$0xff]
    %v68 = vld [vmem:[#allocation5 + $0xc8] sm:$0xff]
    %v69 = vld [vmem:[#allocation5 + $0xd0] sm:$0xff]
    %v70 = vld [vmem:[#allocation5 + $0xd8] sm:$0xff]
    %v71 = vld [vmem:[#allocation5 + $0xe0] sm:$0xff]
    %v72 = vld [vmem:[#allocation5 + $0xe8] sm:$0xff]
    %v73 = vld [vmem:[#allocation5 + $0xf0] sm:$0xff]
    %v74 = vld [vmem:[#allocation5 + $0xf8] sm:$0xff]
    %v75 = vld [vmem:[%s2] sm:$0x1]
    %v77 = vlaneseq
    %v78 = vshrl.u32 %v77, 7
    %v79 = vsub.s32 0, %v78
    %v80 = vrot.slane %v75, %v79
    %82 = vmatprep.subr.mxu0 0.0
    %83 = vmatpush1.msra.mxu0 %v43
    %84 = vmatprep.subr.mxu0 0.0
    %85 = vmatpush1.msra.mxu0 %v44
    %86 = vmatprep.subr.mxu0 0.0
    %87 = vmatpush1.msra.mxu0 %v45
    %88 = vmatprep.subr.mxu0 0.0
    %89 = vmatpush1.msra.mxu0 %v46
    %90 = vmatprep.subr.mxu0 0.0
    %91 = vmatpush1.msra.mxu0 %v47
    %92 = vmatprep.subr.mxu0 0.0
    %93 = vmatpush1.msra.mxu0 %v48
    %94 = vmatprep.subr.mxu0 0.0
    %95 = vmatpush1.msra.mxu0 %v49
    %96 = vmatprep.subr.mxu0 0.0
    %97 = vmatpush1.msra.mxu0 %v50
    %98 = vmatprep.subr.mxu0 0.0
    %99 = vmatpush1.msra.mxu0 %v51
    %100 = vmatprep.subr.mxu0 0.0
    %101 = vmatpush1.msra.mxu0 %v52
    %102 = vmatprep.subr.mxu0 0.0
    %103 = vmatpush1.msra.mxu0 %v53
    %104 = vmatprep.subr.mxu0 0.0
    %105 = vmatpush1.msra.mxu0 %v54
    %106 = vmatprep.subr.mxu0 0.0
    %107 = vmatpush1.msra.mxu0 %v55
    %108 = vmatprep.subr.mxu0 0.0
    %109 = vmatpush1.msra.mxu0 %v56
    %110 = vmatprep.subr.mxu0 0.0
    %111 = vmatpush1.msra.mxu0 %v57
    %112 = vmatprep.subr.mxu0 0.0
    %113 = vmatpush1.msra.mxu0 %v58
    %114 = vmatprep.subr.mxu0 0.0
    %115 = vmatpush1.msra.mxu0 %v59
    %116 = vmatprep.subr.mxu0 0.0
    %117 = vmatpush1.msra.mxu0 %v60
    %118 = vmatprep.subr.mxu0 0.0
    %119 = vmatpush1.msra.mxu0 %v61
    %120 = vmatprep.subr.mxu0 0.0
    %121 = vmatpush1.msra.mxu0 %v62
    %122 = vmatprep.subr.mxu0 0.0
    %123 = vmatpush1.msra.mxu0 %v63
    %124 = vmatprep.subr.mxu0 0.0
    %125 = vmatpush1.msra.mxu0 %v64
    %126 = vmatprep.subr.mxu0 0.0
    %127 = vmatpush1.msra.mxu0 %v65
    %128 = vmatprep.subr.mxu0 0.0
    %129 = vmatpush1.msra.mxu0 %v66
    %130 = vmatprep.subr.mxu0 0.0
    %131 = vmatpush1.msra.mxu0 %v67
    %132 = vmatprep.subr.mxu0 0.0
    %133 = vmatpush1.msra.mxu0 %v68
    %134 = vmatprep.subr.mxu0 0.0
    %135 = vmatpush1.msra.mxu0 %v69
    %136 = vmatprep.subr.mxu0 0.0
    %137 = vmatpush1.msra.mxu0 %v70
    %138 = vmatprep.subr.mxu0 0.0
    %139 = vmatpush1.msra.mxu0 %v71
    %140 = vmatprep.subr.mxu0 0.0
    %141 = vmatpush1.msra.mxu0 %v72
    %142 = vmatprep.subr.mxu0 0.0
    %143 = vmatpush1.msra.mxu0 %v73
    %144 = vmatprep.subr.mxu0 0.0
    %145 = vmatpush1.msra.mxu0 %v74
    %146 = vmatprep.mubr.f32.mxu0 %v42
    %147 = vmatmul.mubr.f32.gmra.mrb[0].mxu0 %v41
    %v148 = vpop.f32.mrb[0].mxu0
    %v149 = vadd.f32 %v80, %v148
    %v150 = vpop.f32.mrb[0].mxu0
    %151 = vdwg.mxu0
    %152 = vst [vmem:[#allocation7] sm:$0xff] %v149
    // Predicated region
    $region22: #{tpu_custom_call.1} parent=1 // pred_check
      _
    $region23: #{tpu_custom_call.1} parent=1 // pred_check_branch
      %154 = sbr.rel (0) target = $region25
    $region24: #{tpu_custom_call.1} parent=1 // pred_region
      %s156 = ssub.s32 128, 128
      %157 = vsyncadd [#allocation4], %s156
      %s159 = sshll.u32 [#allocation7], 4
      %s160 = int_to_ptr.vmem [resolvable:$true] %s159
      %162 = dma.vmem_to_hbm [thread:$0]  %s160, 128, %s3, [#allocation4]
    $region25: #{tpu_custom_call.1} parent=1 // pred_fallthru
      _
    // Predicated region
    $region26: #{tpu_custom_call.1} parent=1 // pred_check
      _
    $region27: #{tpu_custom_call.1} parent=1 // pred_check_branch
      %164 = sbr.rel (0) target = $region29
    $region28: #{tpu_custom_call.1} parent=1 // pred_region
      %165 = dma.done [#allocation4], 128
    $region29: #{tpu_custom_call.1} parent=1 // pred_fallthru
      _
    %166 = vsyncpa [#allocation3], 1
    %167 = vsyncpa [#allocation6], 1
    %168 = vsyncpa [#allocation4], 1

</llo_original>
